<compile_context>
chip_gen: v5e
topology: v5e:2x2
jax: 0.10.0
libtpu: 0.0.40
codegen_flags: <defaults>
</compile_context>

<pallas_src>
import functools

import jax
import jax.numpy as jnp
from jax.experimental import pallas as pl
from jax.experimental.pallas import tpu as pltpu


_GROUP = 128            # points per lane-group; makes the kernel's input tile lane-dense
_PALLAS_MIN_BYTES = 1 << 20   # below this, launch/step overhead dominates a zero-FLOP op


def _pick_row_tile(nrows, batch):
    """Pick TM = number of 128-point groups per tile.

    Prefer large tiles (amortize per-grid-step overhead), but keep grid product
    batch * (nrows // TM) even and >= 2 so both v7x TensorCores get balanced work.
    Falls back to a full-extent block (TM == nrows) when nrows has no divisor in the
    candidate list — always legal (block == full dim) and, with the lane-dense grouped
    layout, never VMEM-dangerous (~28 B/point, not ~512 B/point).
    """
    candidates = [tm for tm in (512, 256, 128, 64, 32, 16, 8) if nrows % tm == 0]
    if not candidates:
        return nrows
    for tm in candidates:                       # largest first
        prod = batch * (nrows // tm)
        if prod >= 2 and prod % 2 == 0:
            return tm
    for tm in candidates:
        if batch * (nrows // tm) >= 2:
            return tm
    return candidates[0]


def _deinterleave_kernel(pcg_ref, feat_ref, y_ref, *, channels, n_feat):
    """Per (batch, group-tile) block.

    pcg_ref : (1, TM, 128*channels)  lane-dense grouped view of pc
    feat_ref: (1, n_feat, TM, 128)   lane-dense output (point index on lanes)
    y_ref   : VMEM scratch (128*channels, TM)
    """
    # Stage 1: one whole-tile transpose on a lane-dense operand (vs. the old 7/128-dense
    # operand -> ~18x less XLU work and dense VMEM loads).
    y_ref[...] = jnp.transpose(pcg_ref[0], (1, 0))                  # (128*C, TM)

    # Stage 2: per feature channel c, rows of y at indices (3+c) + channels*g, g=0..127,
    # hold that channel for the 128 points of each group.  A stride-`channels` sublane
    # load gathers them; a small dense transpose restores point-major order.
    for c in range(n_feat):                                         # static, tiny loop
        zc = y_ref[pl.ds(3 + c, _GROUP, stride=channels), :]        # (128, TM)
        feat_ref[0, c, :, :] = jnp.transpose(zc, (1, 0))            # (TM, 128)


def break_up_pc_pallas(pc):
    """Pallas implementation of the hot path of PointNet2Base._break_up_pc.

    Returns (xyz, features): xyz (B, N, 3) as a plain XLA slice (a last-dim-3 kernel
    output would be all lane-masked stores), features (B, F, N) from the lane-dense
    grouped de-interleave kernel.
    """
    B, N, C = pc.shape
    F = C - 3
    assert F > 0, "this path assumes pc.shape[-1] > 3"
    itemsize = jnp.dtype(pc.dtype).itemsize

    xyz = pc[..., :3]   # kept out of the kernel (see header comment)

    # Pad N to a multiple of 128 so pc can be viewed as (B, N/128, 128*C) for free.
    # Padding costs one extra XLA copy only when N is not already 128-aligned.
    n_pad = ((N + _GROUP - 1) // _GROUP) * _GROUP
    pc_p = pc if n_pad == N else jnp.pad(pc, ((0, 0), (0, n_pad - N), (0, 0)))
    nrows = n_pad // _GROUP
    pcg = pc_p.reshape(B, nrows, _GROUP * C)        # free reshape (trailing dims merge)

    tm = _pick_row_tile(nrows, B)
    grid = (B, nrows // tm)

    cost = pl.CostEstimate(
        flops=0, transcendentals=0,
        bytes_accessed=(B * n_pad * C + B * F * n_pad) * itemsize)

    feat_g = pl.pallas_call(
        functools.partial(_deinterleave_kernel, channels=C, n_feat=F),
        out_shape=jax.ShapeDtypeStruct((B, F, nrows, _GROUP), pc.dtype),
        grid=grid,
        in_specs=[pl.BlockSpec((1, tm, _GROUP * C), lambda b, t: (b, t, 0))],
        out_specs=pl.BlockSpec((1, F, tm, _GROUP), lambda b, t: (b, 0, t, 0)),
        scratch_shapes=[pltpu.VMEM((_GROUP * C, tm), pc.dtype)],
        compiler_params=pltpu.CompilerParams(
            dimension_semantics=("parallel", "parallel")),
        cost_estimate=cost,
    )(pcg)

    features = feat_g.reshape(B, F, n_pad)          # free reshape (trailing dims merge)
    if n_pad != N:
        features = features[:, :, :N]               # drop padded tail points
    return xyz, features


def _break_up_pc_reference(pc):
    """Plain-JAX semantics of the PyTorch _break_up_pc (small inputs / correctness check)."""
    xyz = pc[..., :3]
    features = jnp.transpose(pc[..., 3:], (0, 2, 1)) if pc.shape[-1] > 3 else None
    return xyz, features


class PointNet2Base:
    """JAX mirror of the PyTorch base class (empty SA / FP module lists)."""

    def __init__(self, use_rgb=True, pallas_min_bytes=_PALLAS_MIN_BYTES):
        self.SA_modules = []   # empty in the base class — populated only by subclasses
        self.FP_modules = []
        self.use_rgb = use_rgb          # set by subclasses in PyTorch; gate as in the spec
        self.pallas_min_bytes = pallas_min_bytes

    def _break_up_pc(self, pc):
        if pc.shape[-1] > 3 and self.use_rgb:
            nbytes = pc.size * jnp.dtype(pc.dtype).itemsize
            if nbytes < self.pallas_min_bytes or jnp.dtype(pc.dtype).itemsize != 4:
                # Tiny input (launch overhead dominates a zero-FLOP op) or a packed
                # sub-32-bit dtype: let XLA fuse the slice/transpose instead.
                return _break_up_pc_reference(pc)
            return break_up_pc_pallas(pc)
        return pc[..., :3], None        # no feature channels (or use_rgb=False) -> xyz only

    def forward(self, pointcloud):
        xyz, features = self._break_up_pc(pointcloud)
        l_xyz, l_features, sample_ids = [xyz], [features], []

        for i in range(len(self.SA_modules)):                       # empty in base class
            li_xyz, _, li_features, sample_idx = self.SA_modules[i](l_xyz[i], l_features[i])
            l_xyz.append(li_xyz)
            l_features.append(li_features)
            if sample_idx[0] is not None:
                sample_ids.append(sample_idx[0])

        for i in range(-1, -(len(self.FP_modules) + 1), -1):        # empty in base class
            l_features[i - 1] = self.FP_modules[i](
                l_xyz[i - 1], l_xyz[i], l_features[i - 1], l_features[i])

        l_features = {f'res{i}': f for i, f in enumerate(l_features) if f is not None}
        l_xyz = {f'res{i}': x for i, x in enumerate(l_xyz) if x is not None}
        return {'features': l_features, 'context_pos': l_xyz, 'sample_ids': sample_ids}


if __name__ == "__main__":
    key = jax.random.PRNGKey(0)
    k1, k2 = jax.random.split(key)

    # --- direct kernel test, 128-aligned N -------------------------------------------
    B, N, C = 2, 2048, 7                         # 3 xyz + 4 feature channels
    pc = jax.random.normal(k1, (B, N, C), dtype=jnp.float32)
    xyz_k, feat_k = break_up_pc_pallas(pc)
    jax.block_until_ready((xyz_k, feat_k))

    xyz_r, feat_r = _break_up_pc_reference(pc)
    assert xyz_k.shape == (B, N, 3) and feat_k.shape == (B, C - 3, N)
    assert jnp.array_equal(xyz_k, xyz_r)
    assert jnp.array_equal(feat_k, feat_r)

    # --- direct kernel test, non-128-multiple N (exercises pad + tail-slice path) -----
    B2, N2 = 1, 300
    pc2 = jax.random.normal(k2, (B2, N2, C), dtype=jnp.float32)
    xyz2_k, feat2_k = break_up_pc_pallas(pc2)
    jax.block_until_ready((xyz2_k, feat2_k))
    xyz2_r, feat2_r = _break_up_pc_reference(pc2)
    assert xyz2_k.shape == (B2, N2, 3) and feat2_k.shape == (B2, C - 3, N2)
    assert jnp.array_equal(xyz2_k, xyz2_r)
    assert jnp.array_equal(feat2_k, feat2_r)

    # --- full forward pass, routed through the Pallas kernel --------------------------
    model = PointNet2Base(use_rgb=True, pallas_min_bytes=0)
    out = model.forward(pc)
    jax.block_until_ready(out)

    assert out['context_pos']['res0'].shape == (B, N, 3)
    assert out['features']['res0'].shape == (B, C - 3, N)
    assert out['sample_ids'] == []
    assert jnp.array_equal(out['context_pos']['res0'], xyz_r)
    assert jnp.array_equal(out['features']['res0'], feat_r)

    print("KERNEL_OK")
</pallas_src>

<mosaic_0001>
module attributes {stable_mosaic.version = 11 : i64} {
  func.func @_deinterleave_kernel(%arg0: i32, %arg1: i32, %arg2: memref<1x16x896xf32, #tpu.memory_space<vmem>>, %arg3: memref<1x4x16x128xf32, #tpu.memory_space<vmem>>, %arg4: memref<896x16xf32, #tpu.memory_space<vmem>>) attributes {dimension_semantics = [#tpu.dimension_semantics<parallel>, #tpu.dimension_semantics<parallel>], iteration_bounds = array<i64: 2, 1>, scalar_prefetch = 0 : i64, scratch_operands = 1 : i64, tpu.core_type = #tpu.core_type<tc>, window_params = [{transform_indices = @transform_0, window_bounds = array<i64: 1, 16, 896>}, {transform_indices = @transform_1, window_bounds = array<i64: 1, 4, 16, 128>}]} {
    %c0 = arith.constant 0 : index
    %c0_0 = arith.constant 0 : index
    %c0_1 = arith.constant 0 : index
    %0 = vector.load %arg2[%c0, %c0_0, %c0_1] : memref<1x16x896xf32, #tpu.memory_space<vmem>>, vector<1x16x896xf32>
    %1 = vector.shape_cast %0 : vector<1x16x896xf32> to vector<16x896xf32>
    %2 = tpu.transpose %1, [1, 0] : vector<16x896xf32> -> vector<896x16xf32>
    %c0_2 = arith.constant 0 : index
    %c0_3 = arith.constant 0 : index
    %3 = vector.load %arg4[%c0_2, %c0_3] : memref<896x16xf32, #tpu.memory_space<vmem>>, vector<896x16xf32>
    tpu.vector_store %arg4[%c0_2, %c0_3], %2 {strides = array<i32>} : memref<896x16xf32, #tpu.memory_space<vmem>>, vector<896x16xf32>,
    %c3 = arith.constant 3 : index
    %c0_4 = arith.constant 0 : index
    %4 = tpu.strided_load %arg4[%c3, %c0_4] {strides = array<i32: 7, 1>} : memref<896x16xf32, #tpu.memory_space<vmem>>, vector<128x16xf32>
    %5 = tpu.transpose %4, [1, 0] : vector<128x16xf32> -> vector<16x128xf32>
    %c0_5 = arith.constant 0 : index
    %c0_6 = arith.constant 0 : index
    %c0_7 = arith.constant 0 : index
    %c0_8 = arith.constant 0 : index
    %6 = vector.load %arg3[%c0_5, %c0_6, %c0_7, %c0_8] : memref<1x4x16x128xf32, #tpu.memory_space<vmem>>, vector<1x1x16x128xf32>
    %7 = vector.shape_cast %6 : vector<1x1x16x128xf32> to vector<16x128xf32>
    %8 = vector.shape_cast %5 : vector<16x128xf32> to vector<1x1x16x128xf32>
    tpu.vector_store %arg3[%c0_5, %c0_6, %c0_7, %c0_8], %8 {strides = array<i32>} : memref<1x4x16x128xf32, #tpu.memory_space<vmem>>, vector<1x1x16x128xf32>,
    %c4 = arith.constant 4 : index
    %c0_9 = arith.constant 0 : index
    %9 = tpu.strided_load %arg4[%c4, %c0_9] {strides = array<i32: 7, 1>} : memref<896x16xf32, #tpu.memory_space<vmem>>, vector<128x16xf32>
    %10 = tpu.transpose %9, [1, 0] : vector<128x16xf32> -> vector<16x128xf32>
    %c0_10 = arith.constant 0 : index
    %c1 = arith.constant 1 : index
    %c0_11 = arith.constant 0 : index
    %c0_12 = arith.constant 0 : index
    %11 = vector.load %arg3[%c0_10, %c1, %c0_11, %c0_12] : memref<1x4x16x128xf32, #tpu.memory_space<vmem>>, vector<1x1x16x128xf32>
    %12 = vector.shape_cast %11 : vector<1x1x16x128xf32> to vector<16x128xf32>
    %13 = vector.shape_cast %10 : vector<16x128xf32> to vector<1x1x16x128xf32>
    tpu.vector_store %arg3[%c0_10, %c1, %c0_11, %c0_12], %13 {strides = array<i32>} : memref<1x4x16x128xf32, #tpu.memory_space<vmem>>, vector<1x1x16x128xf32>,
    %c5 = arith.constant 5 : index
    %c0_13 = arith.constant 0 : index
    %14 = tpu.strided_load %arg4[%c5, %c0_13] {strides = array<i32: 7, 1>} : memref<896x16xf32, #tpu.memory_space<vmem>>, vector<128x16xf32>
    %15 = tpu.transpose %14, [1, 0] : vector<128x16xf32> -> vector<16x128xf32>
    %c0_14 = arith.constant 0 : index
    %c2 = arith.constant 2 : index
    %c0_15 = arith.constant 0 : index
    %c0_16 = arith.constant 0 : index
    %16 = vector.load %arg3[%c0_14, %c2, %c0_15, %c0_16] : memref<1x4x16x128xf32, #tpu.memory_space<vmem>>, vector<1x1x16x128xf32>
    %17 = vector.shape_cast %16 : vector<1x1x16x128xf32> to vector<16x128xf32>
    %18 = vector.shape_cast %15 : vector<16x128xf32> to vector<1x1x16x128xf32>
    tpu.vector_store %arg3[%c0_14, %c2, %c0_15, %c0_16], %18 {strides = array<i32>} : memref<1x4x16x128xf32, #tpu.memory_space<vmem>>, vector<1x1x16x128xf32>,
    %c6 = arith.constant 6 : index
    %c0_17 = arith.constant 0 : index
    %19 = tpu.strided_load %arg4[%c6, %c0_17] {strides = array<i32: 7, 1>} : memref<896x16xf32, #tpu.memory_space<vmem>>, vector<128x16xf32>
    %20 = tpu.transpose %19, [1, 0] : vector<128x16xf32> -> vector<16x128xf32>
    %c0_18 = arith.constant 0 : index
    %c3_19 = arith.constant 3 : index
    %c0_20 = arith.constant 0 : index
    %c0_21 = arith.constant 0 : index
    %21 = vector.load %arg3[%c0_18, %c3_19, %c0_20, %c0_21] : memref<1x4x16x128xf32, #tpu.memory_space<vmem>>, vector<1x1x16x128xf32>
    %22 = vector.shape_cast %21 : vector<1x1x16x128xf32> to vector<16x128xf32>
    %23 = vector.shape_cast %20 : vector<16x128xf32> to vector<1x1x16x128xf32>
    tpu.vector_store %arg3[%c0_18, %c3_19, %c0_20, %c0_21], %23 {strides = array<i32>} : memref<1x4x16x128xf32, #tpu.memory_space<vmem>>, vector<1x1x16x128xf32>,
    return
  }
  func.func @transform_0(%arg0: i32, %arg1: i32) -> (i32, i32, i32) {
    %c0_i32 = arith.constant 0 : i32
    %c0_i32_0 = arith.constant 0 : i32
    return %arg0, %arg1, %c0_i32 : i32, i32, i32
  }
  func.func @transform_1(%arg0: i32, %arg1: i32) -> (i32, i32, i32, i32) {
    %c0_i32 = arith.constant 0 : i32
    %c0_i32_0 = arith.constant 0 : i32
    %c0_i32_1 = arith.constant 0 : i32
    return %arg0, %c0_i32, %arg1, %c0_i32_0 : i32, i32, i32, i32
  }
}

</mosaic_0001>

<llo_original>
// kernel: tpu_custom_call.1
$region0: #{tpu_custom_call.1}
  #allocation0 [shape = 'u32[]', space=smem, size = 0x4, offset = 0x4, fixed_abs, tag = 'smem constant byte address 0x4 - core index']
  #allocation1 [shape = 'u32[72,128]{1,0:T(1,128)}', space=vmem, size = 0x9000, scoped, tag = 'internal scratch']
  #allocation2 [shape = 'f32[896,16]{1,0:T(8,128)}', space=vmem, size = 0x70000, scoped, tag = 'scratch operand']
  %s0 = inlined_call_operand.hbm [shape: f32[2,16,896], index: 0, kind: input, shape index: {}]
  %s1 = inlined_call_operand.hbm [shape: f32[2,4,16,128], index: 1, kind: output, shape index: {}]
  %s2 = sld [smem:[#allocation0]]
  $region41: #{tpu_custom_call.1} parent=0
    _
  %s4 = ssub.s32 1, %s2
  %s5 = scalar_select 0, %s4, %s2
  $region1: #{tpu_custom_call.1} parent=0
    #allocation3 [shape = 'u8[114688]{0}', space=vmem, size = 0x1c000, scoped, tag = 'input window, operand 0']
    #allocation4 [shape = 's32[2]{0}', space=sflag, size = 0x8, scoped, tag = 'scoped memory for tpu_custom_call.1']
    #allocation5 [shape = 's32[2]{0}', space=sflag, size = 0x8, scoped, tag = 'scoped memory for tpu_custom_call.1']
    #allocation6 [shape = 'u8[65536]{0}', space=vmem, size = 0x10000, scoped, tag = 'output window, operand 0']
    %6 = vsyncpa [#allocation4], 0
    %s7 = scalar_lea.sflag [#allocation4], 1
    %8 = vsyncpa %s7, 0
    %9 = vsyncpa [#allocation5], 0
    %s10 = scalar_lea.sflag [#allocation5], 1
    %11 = vsyncpa %s10, 0
    loop: start=0, step=1, limit=4
    $region2: #{tpu_custom_call.1} parent=1 // loop_pre_header
      _
    $region3: #{tpu_custom_call.1} parent=1 // loop_header
      %s13 = sphi 0, %s17
      %p14 = scmp.ge.s32.totalorder %s13, 4
      %s20 = sphi 0, %s32
      %s21 = sphi 0, %s28
      %s22 = sphi 0, %s20
      %s23 = sphi 0, %s21
      %s24 = sphi 0, %s22
      %s25 = sphi 0, %s23
      %s37 = sphi 0, %s39
      %s40 = sphi 0, %s37
      %s41 = sphi 0, %s40
      %s57 = sphi 0, %s41
      %s65 = sphi 0, %s67
      %s68 = sphi 0, %s65
      %s69 = sphi 0, %s68
      %s85 = sphi 0, %s69
    $region4: #{tpu_custom_call.1} parent=1 // loop_header_branch
      %16 = sbr.rel (%p14) target = $region8
    $region5: #{tpu_custom_call.1} parent=1 // loop_body
      %s18 = ssub.s32 %s13, 1
      %s19 = ssub.s32 %s13, 2
      %s26 = sadd.s32 1, %s21
      %p27 = scmp.ge.s32.totalorder %s26, 1
      %s28 = scalar_select %p27, 0, %s26
      %s29 = sadd.s32 1, %s20
      %s30 = scalar_select %p27, %s29, %s20
      %p31 = scmp.ge.s32.totalorder %s30, 2
      %s32 = scalar_select %p31, 0, %s30
      %s33 = ssub.s32 %s20, %s32
      %s34 = ssub.s32 %s21, %s28
      %s35 = sor.u32 %s33, %s34
      %p36 = scmp.eq.s32.totalorder %s35, 0
      %s38 = sadd.s32 %s37, 1
      %s39 = scalar_select %p36, %s37, %s38
      %p42 = pneg %p36
      %p43 = scmp.eq.s32.totalorder %s13, 1
      %p44 = por %p42, %p43
      %p45 = scmp.ne.s32.totalorder %s37, %s40
      %p46 = scmp.eq.s32.totalorder %s13, 0
      %p47 = por %p45, %p46
      %p48 = scmp.ne.s32.totalorder %s37, %s40
      %p49 = scmp.eq.s32.totalorder %s18, 1
      %p50 = por %p48, %p49
      %p51 = scmp.ne.s32.totalorder %s40, %s41
      %p52 = scmp.eq.s32.totalorder %s18, 0
      %p53 = por %p51, %p52
      %p54 = scmp.ne.s32.totalorder %s40, %s41
      %p55 = scmp.eq.s32.totalorder %s19, 1
      %p56 = por %p54, %p55
      %p58 = scmp.ne.s32.totalorder %s41, %s57
      %p59 = scmp.eq.s32.totalorder %s19, 0
      %p60 = por %p58, %p59
      %s61 = ssub.s32 %s20, %s32
      %s62 = ssub.s32 %s21, %s28
      %s63 = sor.u32 %s61, %s62
      %p64 = scmp.eq.s32.totalorder %s63, 0
      %s66 = sadd.s32 %s65, 1
      %s67 = scalar_select %p64, %s65, %s66
      %p70 = pneg %p64
      %p71 = scmp.eq.s32.totalorder %s13, 1
      %p72 = por %p70, %p71
      %p73 = scmp.ne.s32.totalorder %s65, %s68
      %p74 = scmp.eq.s32.totalorder %s13, 0
      %p75 = por %p73, %p74
      %p76 = scmp.ne.s32.totalorder %s65, %s68
      %p77 = scmp.eq.s32.totalorder %s18, 1
      %p78 = por %p76, %p77
      %p79 = scmp.ne.s32.totalorder %s68, %s69
      %p80 = scmp.eq.s32.totalorder %s18, 0
      %p81 = por %p79, %p80
      %p82 = scmp.ne.s32.totalorder %s68, %s69
      %p83 = scmp.eq.s32.totalorder %s19, 1
      %p84 = por %p82, %p83
      %p86 = scmp.ne.s32.totalorder %s69, %s85
      %p87 = scmp.eq.s32.totalorder %s19, 0
      %p88 = por %p86, %p87
      %p89 = scmp.le.s32.totalorder 1, %s13
      %p90 = scmp.lt.s32.totalorder %s13, 3
      %p91 = pnand %p89, %p90
      %p92 = pneg %p91
      // Predicated region
      $region9: #{tpu_custom_call.1} parent=5 // pred_check
        _
      $region10: #{tpu_custom_call.1} parent=5 // pred_check_branch
        %94 = sbr.rel (%p91) target = $region12
      $region11: #{tpu_custom_call.1} parent=5 // pred_region
        %s95 = ssub.s32 %s13, 1
      $region12: #{tpu_custom_call.1} parent=5 // pred_fallthru
        _
      %p96 = scmp.lt.s32.totalorder %s13, 2
      // Predicated region
      $region13: #{tpu_custom_call.1} parent=5 // pred_check
        %p97 = pneg %p96
      $region14: #{tpu_custom_call.1} parent=5 // pred_check_branch
        %99 = sbr.rel (%p97) target = $region16
      $region15: #{tpu_custom_call.1} parent=5 // pred_region
        // Predicated region
        $region17: #{tpu_custom_call.1} parent=15 // pred_check
          %p100 = pneg %p47
        $region18: #{tpu_custom_call.1} parent=15 // pred_check_branch
          %102 = sbr.rel (%p100) target = $region20
        $region19: #{tpu_custom_call.1} parent=15 // pred_region
          %s103 = sand.u32 %s37, 1
          %s104 = scalar_lea.sflag [#allocation4], %s103
          %s105 = sand.u32 %s37, 1
          %s106 = smul.addr %s105, 112
          %s107 = scalar_lea.vmem [#allocation3], %s106
          %s108 = smul.u32 2, %s21
          %110 = vsyncadd %s104, 0
          %s111 = smul.addr %s108, 7
          %s112 = smul.addr %s20, 14
          %s113 = sadd.s32 %s111, %s112
          %s114 = smul.addr %s113, 8
          %s115 = scalar_lea.hbm %s0, %s114
          %s116 = sshll.u32 %s115, 4
          %s117 = int_to_ptr.hbm [resolvable:$true] %s116
          %s118 = sshll.u32 %s107, 4
          %s119 = int_to_ptr.vmem [resolvable:$true] %s118
          %124 = dma.hbm_to_vmem [thread:$0]  %s117, 1792, %s119, %s104, 896, 896, 56
        $region20: #{tpu_custom_call.1} parent=15 // pred_fallthru
          _
      $region16: #{tpu_custom_call.1} parent=5 // pred_fallthru
        _
      %p125 = scmp.le.s32.totalorder 1, %s13
      %p126 = scmp.lt.s32.totalorder %s13, 3
      %p127 = pnand %p125, %p126
      %p128 = pneg %p127
      // Predicated region
      $region21: #{tpu_custom_call.1} parent=5 // pred_check
        _
      $region22: #{tpu_custom_call.1} parent=5 // pred_check_branch
        %130 = sbr.rel (%p127) target = $region24
      $region23: #{tpu_custom_call.1} parent=5 // pred_region
        %s131 = ssub.s32 %s13, 1
        %s132 = sand.u32 %s40, 1
        %s133 = scalar_lea.sflag [#allocation4], %s132
        %s134 = sand.u32 %s40, 1
        %s135 = smul.addr %s134, 112
        %s136 = scalar_lea.vmem [#allocation3], %s135
        // Predicated region
        $region25: #{tpu_custom_call.1} parent=23 // pred_check
          %p137 = pneg %p53
        $region26: #{tpu_custom_call.1} parent=23 // pred_check_branch
          %139 = sbr.rel (%p137) target = $region28
        $region27: #{tpu_custom_call.1} parent=23 // pred_region
          %141 = dma.done %s133, 1792
        $region28: #{tpu_custom_call.1} parent=23 // pred_fallthru
          _
        %s142 = sand.u32 %s40, 1
        %s143 = scalar_lea.sflag [#allocation4], %s142
        %s144 = sand.u32 %s40, 1
        %s145 = smul.addr %s144, 112
        %s146 = scalar_lea.vmem [#allocation3], %s145
        %p147 = pneg %p53
        %p148 = pneg %p50
        %p149 = pneg %p81
        %p150 = pneg %p78
        %s151 = sand.u32 %s68, 1
        %s152 = scalar_lea.sflag [#allocation5], %s151
        %s153 = sand.u32 %s68, 1
        %s154 = smul.addr %s153, 64
        %s155 = scalar_lea.vmem [#allocation6], %s154
        %s156 = smul.u32 2, %s23
        %s157 = smul.u32 2, %s23
        %v158 = vld [vmem:[%s136] sm:$0xff]
        %v159 = vld [vmem:[%s136 + $0x8] sm:$0xff]
        %v160 = vld [vmem:[%s136 + $0x10] sm:$0xff]
        %v161 = vld [vmem:[%s136 + $0x18] sm:$0xff]
        %v162 = vld [vmem:[%s136 + $0x20] sm:$0xff]
        %v163 = vld [vmem:[%s136 + $0x28] sm:$0xff]
        %v164 = vld [vmem:[%s136 + $0x30] sm:$0xff]
        %v165 = vld [vmem:[%s136 + $0x38] sm:$0xff]
        %v166 = vld [vmem:[%s136 + $0x40] sm:$0xff]
        %v167 = vld [vmem:[%s136 + $0x48] sm:$0xff]
        %v168 = vld [vmem:[%s136 + $0x50] sm:$0xff]
        %v169 = vld [vmem:[%s136 + $0x58] sm:$0xff]
        %v170 = vld [vmem:[%s136 + $0x60] sm:$0xff]
        %v171 = vld [vmem:[%s136 + $0x68] sm:$0xff]
        %172 = vxpose.xlu0.b32.start [1/16] %v158, 128
        %173 = vxpose.xlu0.b32.cont [2/16] %v165, 128
        %174 = vxpose.xlu0.b32.cont [3/16] 0.0, 128
        %175 = vxpose.xlu0.b32.cont [4/16] 0.0, 128
        %176 = vxpose.xlu0.b32.cont [5/16] 0.0, 128
        %177 = vxpose.xlu0.b32.cont [6/16] 0.0, 128
        %178 = vxpose.xlu0.b32.cont [7/16] 0.0, 128
        %179 = vxpose.xlu0.b32.cont [8/16] 0.0, 128
        %180 = vxpose.xlu0.b32.cont [9/16] 0.0, 128
        %181 = vxpose.xlu0.b32.cont [10/16] 0.0, 128
        %182 = vxpose.xlu0.b32.cont [11/16] 0.0, 128
        %183 = vxpose.xlu0.b32.cont [12/16] 0.0, 128
        %184 = vxpose.xlu0.b32.cont [13/16] 0.0, 128
        %185 = vxpose.xlu0.b32.cont [14/16] 0.0, 128
        %186 = vxpose.xlu0.b32.cont [15/16] 0.0, 128
        %187 = vxpose.xlu0.b32.end [16/16] 0.0, 128
        %v188 = vpop.trf.xlu0
        %v189 = vpop.trf.xlu0
        %v190 = vpop.trf.xlu0
        %v191 = vpop.trf.xlu0
        %v192 = vpop.trf.xlu0
        %v193 = vpop.trf.xlu0
        %v194 = vpop.trf.xlu0
        %v195 = vpop.trf.xlu0
        %v196 = vpop.trf.xlu0
        %v197 = vpop.trf.xlu0
        %v198 = vpop.trf.xlu0
        %v199 = vpop.trf.xlu0
        %v200 = vpop.trf.xlu0
        %v201 = vpop.trf.xlu0
        %v202 = vpop.trf.xlu0
        %v203 = vpop.trf.xlu0
        %204 = vxpose.xlu0.b32.start [1/16] %v159, 128
        %205 = vxpose.xlu0.b32.cont [2/16] %v166, 128
        %206 = vxpose.xlu0.b32.cont [3/16] 0.0, 128
        %207 = vxpose.xlu0.b32.cont [4/16] 0.0, 128
        %208 = vxpose.xlu0.b32.cont [5/16] 0.0, 128
        %209 = vxpose.xlu0.b32.cont [6/16] 0.0, 128
        %210 = vxpose.xlu0.b32.cont [7/16] 0.0, 128
        %211 = vxpose.xlu0.b32.cont [8/16] 0.0, 128
        %212 = vxpose.xlu0.b32.cont [9/16] 0.0, 128
        %213 = vxpose.xlu0.b32.cont [10/16] 0.0, 128
        %214 = vxpose.xlu0.b32.cont [11/16] 0.0, 128
        %215 = vxpose.xlu0.b32.cont [12/16] 0.0, 128
        %216 = vxpose.xlu0.b32.cont [13/16] 0.0, 128
        %217 = vxpose.xlu0.b32.cont [14/16] 0.0, 128
        %218 = vxpose.xlu0.b32.cont [15/16] 0.0, 128
        %219 = vxpose.xlu0.b32.end [16/16] 0.0, 128
        %v220 = vpop.trf.xlu0
        %v221 = vpop.trf.xlu0
        %v222 = vpop.trf.xlu0
        %v223 = vpop.trf.xlu0
        %v224 = vpop.trf.xlu0
        %v225 = vpop.trf.xlu0
        %v226 = vpop.trf.xlu0
        %v227 = vpop.trf.xlu0
        %v228 = vpop.trf.xlu0
        %v229 = vpop.trf.xlu0
        %v230 = vpop.trf.xlu0
        %v231 = vpop.trf.xlu0
        %v232 = vpop.trf.xlu0
        %v233 = vpop.trf.xlu0
        %v234 = vpop.trf.xlu0
        %v235 = vpop.trf.xlu0
        %236 = vxpose.xlu0.b32.start [1/16] %v160, 128
        %237 = vxpose.xlu0.b32.cont [2/16] %v167, 128
        %238 = vxpose.xlu0.b32.cont [3/16] 0.0, 128
        %239 = vxpose.xlu0.b32.cont [4/16] 0.0, 128
        %240 = vxpose.xlu0.b32.cont [5/16] 0.0, 128
        %241 = vxpose.xlu0.b32.cont [6/16] 0.0, 128
        %242 = vxpose.xlu0.b32.cont [7/16] 0.0, 128
        %243 = vxpose.xlu0.b32.cont [8/16] 0.0, 128
        %244 = vxpose.xlu0.b32.cont [9/16] 0.0, 128
        %245 = vxpose.xlu0.b32.cont [10/16] 0.0, 128
        %246 = vxpose.xlu0.b32.cont [11/16] 0.0, 128
        %247 = vxpose.xlu0.b32.cont [12/16] 0.0, 128
        %248 = vxpose.xlu0.b32.cont [13/16] 0.0, 128
        %249 = vxpose.xlu0.b32.cont [14/16] 0.0, 128
        %250 = vxpose.xlu0.b32.cont [15/16] 0.0, 128
        %251 = vxpose.xlu0.b32.end [16/16] 0.0, 128
        %v252 = vpop.trf.xlu0
        %v253 = vpop.trf.xlu0
        %v254 = vpop.trf.xlu0
        %v255 = vpop.trf.xlu0
        %v256 = vpop.trf.xlu0
        %v257 = vpop.trf.xlu0
        %v258 = vpop.trf.xlu0
        %v259 = vpop.trf.xlu0
        %v260 = vpop.trf.xlu0
        %v261 = vpop.trf.xlu0
        %v262 = vpop.trf.xlu0
        %v263 = vpop.trf.xlu0
        %v264 = vpop.trf.xlu0
        %v265 = vpop.trf.xlu0
        %v266 = vpop.trf.xlu0
        %v267 = vpop.trf.xlu0
        %268 = vxpose.xlu0.b32.start [1/16] %v161, 128
        %269 = vxpose.xlu0.b32.cont [2/16] %v168, 128
        %270 = vxpose.xlu0.b32.cont [3/16] 0.0, 128
        %271 = vxpose.xlu0.b32.cont [4/16] 0.0, 128
        %272 = vxpose.xlu0.b32.cont [5/16] 0.0, 128
        %273 = vxpose.xlu0.b32.cont [6/16] 0.0, 128
        %274 = vxpose.xlu0.b32.cont [7/16] 0.0, 128
        %275 = vxpose.xlu0.b32.cont [8/16] 0.0, 128
        %276 = vxpose.xlu0.b32.cont [9/16] 0.0, 128
        %277 = vxpose.xlu0.b32.cont [10/16] 0.0, 128
        %278 = vxpose.xlu0.b32.cont [11/16] 0.0, 128
        %279 = vxpose.xlu0.b32.cont [12/16] 0.0, 128
        %280 = vxpose.xlu0.b32.cont [13/16] 0.0, 128
        %281 = vxpose.xlu0.b32.cont [14/16] 0.0, 128
        %282 = vxpose.xlu0.b32.cont [15/16] 0.0, 128
        %283 = vxpose.xlu0.b32.end [16/16] 0.0, 128
        %v284 = vpop.trf.xlu0
        %v285 = vpop.trf.xlu0
        %v286 = vpop.trf.xlu0
        %v287 = vpop.trf.xlu0
        %v288 = vpop.trf.xlu0
        %v289 = vpop.trf.xlu0
        %v290 = vpop.trf.xlu0
        %v291 = vpop.trf.xlu0
        %v292 = vpop.trf.xlu0
        %v293 = vpop.trf.xlu0
        %v294 = vpop.trf.xlu0
        %v295 = vpop.trf.xlu0
        %v296 = vpop.trf.xlu0
        %v297 = vpop.trf.xlu0
        %v298 = vpop.trf.xlu0
        %v299 = vpop.trf.xlu0
        %300 = vxpose.xlu0.b32.start [1/16] %v162, 128
        %301 = vxpose.xlu0.b32.cont [2/16] %v169, 128
        %302 = vxpose.xlu0.b32.cont [3/16] 0.0, 128
        %303 = vxpose.xlu0.b32.cont [4/16] 0.0, 128
        %304 = vxpose.xlu0.b32.cont [5/16] 0.0, 128
        %305 = vxpose.xlu0.b32.cont [6/16] 0.0, 128
        %306 = vxpose.xlu0.b32.cont [7/16] 0.0, 128
        %307 = vxpose.xlu0.b32.cont [8/16] 0.0, 128
        %308 = vxpose.xlu0.b32.cont [9/16] 0.0, 128
        %309 = vxpose.xlu0.b32.cont [10/16] 0.0, 128
        %310 = vxpose.xlu0.b32.cont [11/16] 0.0, 128
        %311 = vxpose.xlu0.b32.cont [12/16] 0.0, 128
        %312 = vxpose.xlu0.b32.cont [13/16] 0.0, 128
        %313 = vxpose.xlu0.b32.cont [14/16] 0.0, 128
        %314 = vxpose.xlu0.b32.cont [15/16] 0.0, 128
        %315 = vxpose.xlu0.b32.end [16/16] 0.0, 128
        %v316 = vpop.trf.xlu0
        %v317 = vpop.trf.xlu0
        %v318 = vpop.trf.xlu0
        %v319 = vpop.trf.xlu0
        %v320 = vpop.trf.xlu0
        %v321 = vpop.trf.xlu0
        %v322 = vpop.trf.xlu0
        %v323 = vpop.trf.xlu0
        %v324 = vpop.trf.xlu0
        %v325 = vpop.trf.xlu0
        %v326 = vpop.trf.xlu0
        %v327 = vpop.trf.xlu0
        %v328 = vpop.trf.xlu0
        %v329 = vpop.trf.xlu0
        %v330 = vpop.trf.xlu0
        %v331 = vpop.trf.xlu0
        %332 = vxpose.xlu0.b32.start [1/16] %v163, 128
        %333 = vxpose.xlu0.b32.cont [2/16] %v170, 128
        %334 = vxpose.xlu0.b32.cont [3/16] 0.0, 128
        %335 = vxpose.xlu0.b32.cont [4/16] 0.0, 128
        %336 = vxpose.xlu0.b32.cont [5/16] 0.0, 128
        %337 = vxpose.xlu0.b32.cont [6/16] 0.0, 128
        %338 = vxpose.xlu0.b32.cont [7/16] 0.0, 128
        %339 = vxpose.xlu0.b32.cont [8/16] 0.0, 128
        %340 = vxpose.xlu0.b32.cont [9/16] 0.0, 128
        %341 = vxpose.xlu0.b32.cont [10/16] 0.0, 128
        %342 = vxpose.xlu0.b32.cont [11/16] 0.0, 128
        %343 = vxpose.xlu0.b32.cont [12/16] 0.0, 128
        %344 = vxpose.xlu0.b32.cont [13/16] 0.0, 128
        %345 = vxpose.xlu0.b32.cont [14/16] 0.0, 128
        %346 = vxpose.xlu0.b32.cont [15/16] 0.0, 128
        %347 = vxpose.xlu0.b32.end [16/16] 0.0, 128
        %v348 = vpop.trf.xlu0
        %v349 = vpop.trf.xlu0
        %v350 = vpop.trf.xlu0
        %v351 = vpop.trf.xlu0
        %v352 = vpop.trf.xlu0
        %v353 = vpop.trf.xlu0
        %v354 = vpop.trf.xlu0
        %v355 = vpop.trf.xlu0
        %v356 = vpop.trf.xlu0
        %v357 = vpop.trf.xlu0
        %v358 = vpop.trf.xlu0
        %v359 = vpop.trf.xlu0
        %v360 = vpop.trf.xlu0
        %v361 = vpop.trf.xlu0
        %v362 = vpop.trf.xlu0
        %v363 = vpop.trf.xlu0
        %364 = vxpose.xlu0.b32.start [1/16] %v164, 128
        %365 = vxpose.xlu0.b32.cont [2/16] %v171, 128
        %366 = vxpose.xlu0.b32.cont [3/16] 0.0, 128
        %367 = vxpose.xlu0.b32.cont [4/16] 0.0, 128
        %368 = vxpose.xlu0.b32.cont [5/16] 0.0, 128
        %369 = vxpose.xlu0.b32.cont [6/16] 0.0, 128
        %370 = vxpose.xlu0.b32.cont [7/16] 0.0, 128
        %371 = vxpose.xlu0.b32.cont [8/16] 0.0, 128
        %372 = vxpose.xlu0.b32.cont [9/16] 0.0, 128
        %373 = vxpose.xlu0.b32.cont [10/16] 0.0, 128
        %374 = vxpose.xlu0.b32.cont [11/16] 0.0, 128
        %375 = vxpose.xlu0.b32.cont [12/16] 0.0, 128
        %376 = vxpose.xlu0.b32.cont [13/16] 0.0, 128
        %377 = vxpose.xlu0.b32.cont [14/16] 0.0, 128
        %378 = vxpose.xlu0.b32.cont [15/16] 0.0, 128
        %379 = vxpose.xlu0.b32.end [16/16] 0.0, 128
        %v380 = vpop.trf.xlu0
        %v381 = vpop.trf.xlu0
        %v382 = vpop.trf.xlu0
        %v383 = vpop.trf.xlu0
        %v384 = vpop.trf.xlu0
        %v385 = vpop.trf.xlu0
        %v386 = vpop.trf.xlu0
        %v387 = vpop.trf.xlu0
        %v388 = vpop.trf.xlu0
        %v389 = vpop.trf.xlu0
        %v390 = vpop.trf.xlu0
        %v391 = vpop.trf.xlu0
        %v392 = vpop.trf.xlu0
        %v393 = vpop.trf.xlu0
        %v394 = vpop.trf.xlu0
        %v395 = vpop.trf.xlu0
        %vm396 = vcmask 130048
        %397 = vst.msk [vmem:[#allocation2] sm:$0xff] %vm396, %v188
        %398 = vst.msk [vmem:[#allocation2 + $0x8] sm:$0xff] %vm396, %v189
        %399 = vst.msk [vmem:[#allocation2 + $0x10] sm:$0xff] %vm396, %v190
        %400 = vst.msk [vmem:[#allocation2 + $0x18] sm:$0xff] %vm396, %v191
        %401 = vst.msk [vmem:[#allocation2 + $0x20] sm:$0xff] %vm396, %v192
        %402 = vst.msk [vmem:[#allocation2 + $0x28] sm:$0xff] %vm396, %v193
        %403 = vst.msk [vmem:[#allocation2 + $0x30] sm:$0xff] %vm396, %v194
        %404 = vst.msk [vmem:[#allocation2 + $0x38] sm:$0xff] %vm396, %v195
        %405 = vst.msk [vmem:[#allocation2 + $0x40] sm:$0xff] %vm396, %v196
        %406 = vst.msk [vmem:[#allocation2 + $0x48] sm:$0xff] %vm396, %v197
        %407 = vst.msk [vmem:[#allocation2 + $0x50] sm:$0xff] %vm396, %v198
        %408 = vst.msk [vmem:[#allocation2 + $0x58] sm:$0xff] %vm396, %v199
        %409 = vst.msk [vmem:[#allocation2 + $0x60] sm:$0xff] %vm396, %v200
        %410 = vst.msk [vmem:[#allocation2 + $0x68] sm:$0xff] %vm396, %v201
        %411 = vst.msk [vmem:[#allocation2 + $0x70] sm:$0xff] %vm396, %v202
        %412 = vst.msk [vmem:[#allocation2 + $0x78] sm:$0xff] %vm396, %v203
        %413 = vst.msk [vmem:[#allocation2 + $0x80] sm:$0xff] %vm396, %v220
        %414 = vst.msk [vmem:[#allocation2 + $0x88] sm:$0xff] %vm396, %v221
        %415 = vst.msk [vmem:[#allocation2 + $0x90] sm:$0xff] %vm396, %v222
        %416 = vst.msk [vmem:[#allocation2 + $0x98] sm:$0xff] %vm396, %v223
        %417 = vst.msk [vmem:[#allocation2 + $0xa0] sm:$0xff] %vm396, %v224
        %418 = vst.msk [vmem:[#allocation2 + $0xa8] sm:$0xff] %vm396, %v225
        %419 = vst.msk [vmem:[#allocation2 + $0xb0] sm:$0xff] %vm396, %v226
        %420 = vst.msk [vmem:[#allocation2 + $0xb8] sm:$0xff] %vm396, %v227
        %421 = vst.msk [vmem:[#allocation2 + $0xc0] sm:$0xff] %vm396, %v228
        %422 = vst.msk [vmem:[#allocation2 + $0xc8] sm:$0xff] %vm396, %v229
        %423 = vst.msk [vmem:[#allocation2 + $0xd0] sm:$0xff] %vm396, %v230
        %424 = vst.msk [vmem:[#allocation2 + $0xd8] sm:$0xff] %vm396, %v231
        %425 = vst.msk [vmem:[#allocation2 + $0xe0] sm:$0xff] %vm396, %v232
        %426 = vst.msk [vmem:[#allocation2 + $0xe8] sm:$0xff] %vm396, %v233
        %427 = vst.msk [vmem:[#allocation2 + $0xf0] sm:$0xff] %vm396, %v234
        %428 = vst.msk [vmem:[#allocation2 + $0xf8] sm:$0xff] %vm396, %v235
        %429 = vst.msk [vmem:[#allocation2 + $0x100] sm:$0xff] %vm396, %v252
        %430 = vst.msk [vmem:[#allocation2 + $0x108] sm:$0xff] %vm396, %v253
        %431 = vst.msk [vmem:[#allocation2 + $0x110] sm:$0xff] %vm396, %v254
        %432 = vst.msk [vmem:[#allocation2 + $0x118] sm:$0xff] %vm396, %v255
        %433 = vst.msk [vmem:[#allocation2 + $0x120] sm:$0xff] %vm396, %v256
        %434 = vst.msk [vmem:[#allocation2 + $0x128] sm:$0xff] %vm396, %v257
        %435 = vst.msk [vmem:[#allocation2 + $0x130] sm:$0xff] %vm396, %v258
        %436 = vst.msk [vmem:[#allocation2 + $0x138] sm:$0xff] %vm396, %v259
        %437 = vst.msk [vmem:[#allocation2 + $0x140] sm:$0xff] %vm396, %v260
        %438 = vst.msk [vmem:[#allocation2 + $0x148] sm:$0xff] %vm396, %v261
        %439 = vst.msk [vmem:[#allocation2 + $0x150] sm:$0xff] %vm396, %v262
        %440 = vst.msk [vmem:[#allocation2 + $0x158] sm:$0xff] %vm396, %v263
        %441 = vst.msk [vmem:[#allocation2 + $0x160] sm:$0xff] %vm396, %v264
        %442 = vst.msk [vmem:[#allocation2 + $0x168] sm:$0xff] %vm396, %v265
        %443 = vst.msk [vmem:[#allocation2 + $0x170] sm:$0xff] %vm396, %v266
        %444 = vst.msk [vmem:[#allocation2 + $0x178] sm:$0xff] %vm396, %v267
        %445 = vst.msk [vmem:[#allocation2 + $0x180] sm:$0xff] %vm396, %v284
        %446 = vst.msk [vmem:[#allocation2 + $0x188] sm:$0xff] %vm396, %v285
        %447 = vst.msk [vmem:[#allocation2 + $0x190] sm:$0xff] %vm396, %v286
        %448 = vst.msk [vmem:[#allocation2 + $0x198] sm:$0xff] %vm396, %v287
        %449 = vst.msk [vmem:[#allocation2 + $0x1a0] sm:$0xff] %vm396, %v288
        %450 = vst.msk [vmem:[#allocation2 + $0x1a8] sm:$0xff] %vm396, %v289
        %451 = vst.msk [vmem:[#allocation2 + $0x1b0] sm:$0xff] %vm396, %v290
        %452 = vst.msk [vmem:[#allocation2 + $0x1b8] sm:$0xff] %vm396, %v291
        %453 = vst.msk [vmem:[#allocation2 + $0x1c0] sm:$0xff] %vm396, %v292
        %454 = vst.msk [vmem:[#allocation2 + $0x1c8] sm:$0xff] %vm396, %v293
        %455 = vst.msk [vmem:[#allocation2 + $0x1d0] sm:$0xff] %vm396, %v294
        %456 = vst.msk [vmem:[#allocation2 + $0x1d8] sm:$0xff] %vm396, %v295
        %457 = vst.msk [vmem:[#allocation2 + $0x1e0] sm:$0xff] %vm396, %v296
        %458 = vst.msk [vmem:[#allocation2 + $0x1e8] sm:$0xff] %vm396, %v297
        %459 = vst.msk [vmem:[#allocation2 + $0x1f0] sm:$0xff] %vm396, %v298
        %460 = vst.msk [vmem:[#allocation2 + $0x1f8] sm:$0xff] %vm396, %v299
        %461 = vst.msk [vmem:[#allocation2 + $0x200] sm:$0xff] %vm396, %v316
        %462 = vst.msk [vmem:[#allocation2 + $0x208] sm:$0xff] %vm396, %v317
        %463 = vst.msk [vmem:[#allocation2 + $0x210] sm:$0xff] %vm396, %v318
        %464 = vst.msk [vmem:[#allocation2 + $0x218] sm:$0xff] %vm396, %v319
        %465 = vst.msk [vmem:[#allocation2 + $0x220] sm:$0xff] %vm396, %v320
        %466 = vst.msk [vmem:[#allocation2 + $0x228] sm:$0xff] %vm396, %v321
        %467 = vst.msk [vmem:[#allocation2 + $0x230] sm:$0xff] %vm396, %v322
        %468 = vst.msk [vmem:[#allocation2 + $0x238] sm:$0xff] %vm396, %v323
        %469 = vst.msk [vmem:[#allocation2 + $0x240] sm:$0xff] %vm396, %v324
        %470 = vst.msk [vmem:[#allocation2 + $0x248] sm:$0xff] %vm396, %v325
        %471 = vst.msk [vmem:[#allocation2 + $0x250] sm:$0xff] %vm396, %v326
        %472 = vst.msk [vmem:[#allocation2 + $0x258] sm:$0xff] %vm396, %v327
        %473 = vst.msk [vmem:[#allocation2 + $0x260] sm:$0xff] %vm396, %v328
        %474 = vst.msk [vmem:[#allocation2 + $0x268] sm:$0xff] %vm396, %v329
        %475 = vst.msk [vmem:[#allocation2 + $0x270] sm:$0xff] %vm396, %v330
        %476 = vst.msk [vmem:[#allocation2 + $0x278] sm:$0xff] %vm396, %v331
        %477 = vst.msk [vmem:[#allocation2 + $0x280] sm:$0xff] %vm396, %v348
        %478 = vst.msk [vmem:[#allocation2 + $0x288] sm:$0xff] %vm396, %v349
        %479 = vst.msk [vmem:[#allocation2 + $0x290] sm:$0xff] %vm396, %v350
        %480 = vst.msk [vmem:[#allocation2 + $0x298] sm:$0xff] %vm396, %v351
        %481 = vst.msk [vmem:[#allocation2 + $0x2a0] sm:$0xff] %vm396, %v352
        %482 = vst.msk [vmem:[#allocation2 + $0x2a8] sm:$0xff] %vm396, %v353
        %483 = vst.msk [vmem:[#allocation2 + $0x2b0] sm:$0xff] %vm396, %v354
        %484 = vst.msk [vmem:[#allocation2 + $0x2b8] sm:$0xff] %vm396, %v355
        %485 = vst.msk [vmem:[#allocation2 + $0x2c0] sm:$0xff] %vm396, %v356
        %486 = vst.msk [vmem:[#allocation2 + $0x2c8] sm:$0xff] %vm396, %v357
        %487 = vst.msk [vmem:[#allocation2 + $0x2d0] sm:$0xff] %vm396, %v358
        %488 = vst.msk [vmem:[#allocation2 + $0x2d8] sm:$0xff] %vm396, %v359
        %489 = vst.msk [vmem:[#allocation2 + $0x2e0] sm:$0xff] %vm396, %v360
        %490 = vst.msk [vmem:[#allocation2 + $0x2e8] sm:$0xff] %vm396, %v361
        %491 = vst.msk [vmem:[#allocation2 + $0x2f0] sm:$0xff] %vm396, %v362
        %492 = vst.msk [vmem:[#allocation2 + $0x2f8] sm:$0xff] %vm396, %v363
        %493 = vst.msk [vmem:[#allocation2 + $0x300] sm:$0xff] %vm396, %v380
        %494 = vst.msk [vmem:[#allocation2 + $0x308] sm:$0xff] %vm396, %v381
        %495 = vst.msk [vmem:[#allocation2 + $0x310] sm:$0xff] %vm396, %v382
        %496 = vst.msk [vmem:[#allocation2 + $0x318] sm:$0xff] %vm396, %v383
        %497 = vst.msk [vmem:[#allocation2 + $0x320] sm:$0xff] %vm396, %v384
        %498 = vst.msk [vmem:[#allocation2 + $0x328] sm:$0xff] %vm396, %v385
        %499 = vst.msk [vmem:[#allocation2 + $0x330] sm:$0xff] %vm396, %v386
        %500 = vst.msk [vmem:[#allocation2 + $0x338] sm:$0xff] %vm396, %v387
        %501 = vst.msk [vmem:[#allocation2 + $0x340] sm:$0xff] %vm396, %v388
        %502 = vst.msk [vmem:[#allocation2 + $0x348] sm:$0xff] %vm396, %v389
        %503 = vst.msk [vmem:[#allocation2 + $0x350] sm:$0xff] %vm396, %v390
        %504 = vst.msk [vmem:[#allocation2 + $0x358] sm:$0xff] %vm396, %v391
        %505 = vst.msk [vmem:[#allocation2 + $0x360] sm:$0xff] %vm396, %v392
        %506 = vst.msk [vmem:[#allocation2 + $0x368] sm:$0xff] %vm396, %v393
        %507 = vst.msk [vmem:[#allocation2 + $0x370] sm:$0xff] %vm396, %v394
        %508 = vst.msk [vmem:[#allocation2 + $0x378] sm:$0xff] %vm396, %v395
        %s509 = scalar_lea.vmem [#allocation2], 3
        %v510 = vld [vmem:[%s509] ss:$7 sm:$0xff]
        %s511 = scalar_lea.vmem [#allocation2], 59
        %v512 = vld [vmem:[%s511] ss:$7 sm:$0xff]
        %s513 = scalar_lea.vmem [#allocation2], 115
        %v514 = vld [vmem:[%s513] ss:$7 sm:$0xff]
        %s515 = scalar_lea.vmem [#allocation2], 171
        %v516 = vld [vmem:[%s515] ss:$7 sm:$0xff]
        %s517 = scalar_lea.vmem [#allocation2], 227
        %v518 = vld [vmem:[%s517] ss:$7 sm:$0xff]
        %s519 = scalar_lea.vmem [#allocation2], 283
        %v520 = vld [vmem:[%s519] ss:$7 sm:$0xff]
        %s521 = scalar_lea.vmem [#allocation2], 339
        %v522 = vld [vmem:[%s521] ss:$7 sm:$0xff]
        %s523 = scalar_lea.vmem [#allocation2], 395
        %v524 = vld [vmem:[%s523] ss:$7 sm:$0xff]
        %s525 = scalar_lea.vmem [#allocation2], 451
        %v526 = vld [vmem:[%s525] ss:$7 sm:$0xff]
        %s527 = scalar_lea.vmem [#allocation2], 507
        %v528 = vld [vmem:[%s527] ss:$7 sm:$0xff]
        %s529 = scalar_lea.vmem [#allocation2], 563
        %v530 = vld [vmem:[%s529] ss:$7 sm:$0xff]
        %s531 = scalar_lea.vmem [#allocation2], 619
        %v532 = vld [vmem:[%s531] ss:$7 sm:$0xff]
        %s533 = scalar_lea.vmem [#allocation2], 675
        %v534 = vld [vmem:[%s533] ss:$7 sm:$0xff]
        %s535 = scalar_lea.vmem [#allocation2], 731
        %v536 = vld [vmem:[%s535] ss:$7 sm:$0xff]
        %s537 = scalar_lea.vmem [#allocation2], 787
        %v538 = vld [vmem:[%s537] ss:$7 sm:$0xff]
        %s539 = scalar_lea.vmem [#allocation2], 843
        %v540 = vld [vmem:[%s539] ss:$7 sm:$0xff]
        %541 = vxpose.xlu0.b32.start [1/16] %v510, 128
        %542 = vxpose.xlu0.b32.cont [2/16] %v512, 128
        %543 = vxpose.xlu0.b32.cont [3/16] %v514, 128
        %544 = vxpose.xlu0.b32.cont [4/16] %v516, 128
        %545 = vxpose.xlu0.b32.cont [5/16] %v518, 128
        %546 = vxpose.xlu0.b32.cont [6/16] %v520, 128
        %547 = vxpose.xlu0.b32.cont [7/16] %v522, 128
        %548 = vxpose.xlu0.b32.cont [8/16] %v524, 128
        %549 = vxpose.xlu0.b32.cont [9/16] %v526, 128
        %550 = vxpose.xlu0.b32.cont [10/16] %v528, 128
        %551 = vxpose.xlu0.b32.cont [11/16] %v530, 128
        %552 = vxpose.xlu0.b32.cont [12/16] %v532, 128
        %553 = vxpose.xlu0.b32.cont [13/16] %v534, 128
        %554 = vxpose.xlu0.b32.cont [14/16] %v536, 128
        %555 = vxpose.xlu0.b32.cont [15/16] %v538, 128
        %556 = vxpose.xlu0.b32.end [16/16] %v540, 128
        %v557 = vpop.trf.xlu0
        %v558 = vpop.trf.xlu0
        %v559 = vpop.trf.xlu0
        %v560 = vpop.trf.xlu0
        %v561 = vpop.trf.xlu0
        %v562 = vpop.trf.xlu0
        %v563 = vpop.trf.xlu0
        %v564 = vpop.trf.xlu0
        %v565 = vpop.trf.xlu0
        %v566 = vpop.trf.xlu0
        %v567 = vpop.trf.xlu0
        %v568 = vpop.trf.xlu0
        %v569 = vpop.trf.xlu0
        %v570 = vpop.trf.xlu0
        %v571 = vpop.trf.xlu0
        %v572 = vpop.trf.xlu0
        %573 = vst [vmem:[%s155] sm:$0xff] %v557
        %574 = vst [vmem:[%s155 + $0x8] sm:$0xff] %v558
        %s575 = scalar_lea.vmem [#allocation2], 4
        %v576 = vld [vmem:[%s575] ss:$7 sm:$0xff]
        %s577 = scalar_lea.vmem [#allocation2], 60
        %v578 = vld [vmem:[%s577] ss:$7 sm:$0xff]
        %s579 = scalar_lea.vmem [#allocation2], 116
        %v580 = vld [vmem:[%s579] ss:$7 sm:$0xff]
        %s581 = scalar_lea.vmem [#allocation2], 172
        %v582 = vld [vmem:[%s581] ss:$7 sm:$0xff]
        %s583 = scalar_lea.vmem [#allocation2], 228
        %v584 = vld [vmem:[%s583] ss:$7 sm:$0xff]
        %s585 = scalar_lea.vmem [#allocation2], 284
        %v586 = vld [vmem:[%s585] ss:$7 sm:$0xff]
        %s587 = scalar_lea.vmem [#allocation2], 340
        %v588 = vld [vmem:[%s587] ss:$7 sm:$0xff]
        %s589 = scalar_lea.vmem [#allocation2], 396
        %v590 = vld [vmem:[%s589] ss:$7 sm:$0xff]
        %s591 = scalar_lea.vmem [#allocation2], 452
        %v592 = vld [vmem:[%s591] ss:$7 sm:$0xff]
        %s593 = scalar_lea.vmem [#allocation2], 508
        %v594 = vld [vmem:[%s593] ss:$7 sm:$0xff]
        %s595 = scalar_lea.vmem [#allocation2], 564
        %v596 = vld [vmem:[%s595] ss:$7 sm:$0xff]
        %s597 = scalar_lea.vmem [#allocation2], 620
        %v598 = vld [vmem:[%s597] ss:$7 sm:$0xff]
        %s599 = scalar_lea.vmem [#allocation2], 676
        %v600 = vld [vmem:[%s599] ss:$7 sm:$0xff]
        %s601 = scalar_lea.vmem [#allocation2], 732
        %v602 = vld [vmem:[%s601] ss:$7 sm:$0xff]
        %s603 = scalar_lea.vmem [#allocation2], 788
        %v604 = vld [vmem:[%s603] ss:$7 sm:$0xff]
        %s605 = scalar_lea.vmem [#allocation2], 844
        %v606 = vld [vmem:[%s605] ss:$7 sm:$0xff]
        %607 = vxpose.xlu0.b32.start [1/16] %v576, 128
        %608 = vxpose.xlu0.b32.cont [2/16] %v578, 128
        %609 = vxpose.xlu0.b32.cont [3/16] %v580, 128
        %610 = vxpose.xlu0.b32.cont [4/16] %v582, 128
        %611 = vxpose.xlu0.b32.cont [5/16] %v584, 128
        %612 = vxpose.xlu0.b32.cont [6/16] %v586, 128
        %613 = vxpose.xlu0.b32.cont [7/16] %v588, 128
        %614 = vxpose.xlu0.b32.cont [8/16] %v590, 128
        %615 = vxpose.xlu0.b32.cont [9/16] %v592, 128
        %616 = vxpose.xlu0.b32.cont [10/16] %v594, 128
        %617 = vxpose.xlu0.b32.cont [11/16] %v596, 128
        %618 = vxpose.xlu0.b32.cont [12/16] %v598, 128
        %619 = vxpose.xlu0.b32.cont [13/16] %v600, 128
        %620 = vxpose.xlu0.b32.cont [14/16] %v602, 128
        %621 = vxpose.xlu0.b32.cont [15/16] %v604, 128
        %622 = vxpose.xlu0.b32.end [16/16] %v606, 128
        %v623 = vpop.trf.xlu0
        %v624 = vpop.trf.xlu0
        %v625 = vpop.trf.xlu0
        %v626 = vpop.trf.xlu0
        %v627 = vpop.trf.xlu0
        %v628 = vpop.trf.xlu0
        %v629 = vpop.trf.xlu0
        %v630 = vpop.trf.xlu0
        %v631 = vpop.trf.xlu0
        %v632 = vpop.trf.xlu0
        %v633 = vpop.trf.xlu0
        %v634 = vpop.trf.xlu0
        %v635 = vpop.trf.xlu0
        %v636 = vpop.trf.xlu0
        %v637 = vpop.trf.xlu0
        %v638 = vpop.trf.xlu0
        %s639 = scalar_lea.vmem %s155, 16 [#allocation6]
        %640 = vst [vmem:[%s639] sm:$0xff] %v623
        %641 = vst [vmem:[%s639 + $0x8] sm:$0xff] %v624
        %s642 = scalar_lea.vmem [#allocation2], 5
        %v643 = vld [vmem:[%s642] ss:$7 sm:$0xff]
        %s644 = scalar_lea.vmem [#allocation2], 61
        %v645 = vld [vmem:[%s644] ss:$7 sm:$0xff]
        %s646 = scalar_lea.vmem [#allocation2], 117
        %v647 = vld [vmem:[%s646] ss:$7 sm:$0xff]
        %s648 = scalar_lea.vmem [#allocation2], 173
        %v649 = vld [vmem:[%s648] ss:$7 sm:$0xff]
        %s650 = scalar_lea.vmem [#allocation2], 229
        %v651 = vld [vmem:[%s650] ss:$7 sm:$0xff]
        %s652 = scalar_lea.vmem [#allocation2], 285
        %v653 = vld [vmem:[%s652] ss:$7 sm:$0xff]
        %s654 = scalar_lea.vmem [#allocation2], 341
        %v655 = vld [vmem:[%s654] ss:$7 sm:$0xff]
        %s656 = scalar_lea.vmem [#allocation2], 397
        %v657 = vld [vmem:[%s656] ss:$7 sm:$0xff]
        %s658 = scalar_lea.vmem [#allocation2], 453
        %v659 = vld [vmem:[%s658] ss:$7 sm:$0xff]
        %s660 = scalar_lea.vmem [#allocation2], 509
        %v661 = vld [vmem:[%s660] ss:$7 sm:$0xff]
        %s662 = scalar_lea.vmem [#allocation2], 565
        %v663 = vld [vmem:[%s662] ss:$7 sm:$0xff]
        %s664 = scalar_lea.vmem [#allocation2], 621
        %v665 = vld [vmem:[%s664] ss:$7 sm:$0xff]
        %s666 = scalar_lea.vmem [#allocation2], 677
        %v667 = vld [vmem:[%s666] ss:$7 sm:$0xff]
        %s668 = scalar_lea.vmem [#allocation2], 733
        %v669 = vld [vmem:[%s668] ss:$7 sm:$0xff]
        %s670 = scalar_lea.vmem [#allocation2], 789
        %v671 = vld [vmem:[%s670] ss:$7 sm:$0xff]
        %s672 = scalar_lea.vmem [#allocation2], 845
        %v673 = vld [vmem:[%s672] ss:$7 sm:$0xff]
        %674 = vxpose.xlu0.b32.start [1/16] %v643, 128
        %675 = vxpose.xlu0.b32.cont [2/16] %v645, 128
        %676 = vxpose.xlu0.b32.cont [3/16] %v647, 128
        %677 = vxpose.xlu0.b32.cont [4/16] %v649, 128
        %678 = vxpose.xlu0.b32.cont [5/16] %v651, 128
        %679 = vxpose.xlu0.b32.cont [6/16] %v653, 128
        %680 = vxpose.xlu0.b32.cont [7/16] %v655, 128
        %681 = vxpose.xlu0.b32.cont [8/16] %v657, 128
        %682 = vxpose.xlu0.b32.cont [9/16] %v659, 128
        %683 = vxpose.xlu0.b32.cont [10/16] %v661, 128
        %684 = vxpose.xlu0.b32.cont [11/16] %v663, 128
        %685 = vxpose.xlu0.b32.cont [12/16] %v665, 128
        %686 = vxpose.xlu0.b32.cont [13/16] %v667, 128
        %687 = vxpose.xlu0.b32.cont [14/16] %v669, 128
        %688 = vxpose.xlu0.b32.cont [15/16] %v671, 128
        %689 = vxpose.xlu0.b32.end [16/16] %v673, 128
        %v690 = vpop.trf.xlu0
        %v691 = vpop.trf.xlu0
        %v692 = vpop.trf.xlu0
        %v693 = vpop.trf.xlu0
        %v694 = vpop.trf.xlu0
        %v695 = vpop.trf.xlu0
        %v696 = vpop.trf.xlu0
        %v697 = vpop.trf.xlu0
        %v698 = vpop.trf.xlu0
        %v699 = vpop.trf.xlu0
        %v700 = vpop.trf.xlu0
        %v701 = vpop.trf.xlu0
        %v702 = vpop.trf.xlu0
        %v703 = vpop.trf.xlu0
        %v704 = vpop.trf.xlu0
        %v705 = vpop.trf.xlu0
        %s706 = scalar_lea.vmem %s155, 32 [#allocation6]
        %707 = vst [vmem:[%s706] sm:$0xff] %v690
        %708 = vst [vmem:[%s706 + $0x8] sm:$0xff] %v691
        %s709 = scalar_lea.vmem [#allocation2], 6
        %v710 = vld [vmem:[%s709] ss:$7 sm:$0xff]
        %s711 = scalar_lea.vmem [#allocation2], 62
        %v712 = vld [vmem:[%s711] ss:$7 sm:$0xff]
        %s713 = scalar_lea.vmem [#allocation2], 118
        %v714 = vld [vmem:[%s713] ss:$7 sm:$0xff]
        %s715 = scalar_lea.vmem [#allocation2], 174
        %v716 = vld [vmem:[%s715] ss:$7 sm:$0xff]
        %s717 = scalar_lea.vmem [#allocation2], 230
        %v718 = vld [vmem:[%s717] ss:$7 sm:$0xff]
        %s719 = scalar_lea.vmem [#allocation2], 286
        %v720 = vld [vmem:[%s719] ss:$7 sm:$0xff]
        %s721 = scalar_lea.vmem [#allocation2], 342
        %v722 = vld [vmem:[%s721] ss:$7 sm:$0xff]
        %s723 = scalar_lea.vmem [#allocation2], 398
        %v724 = vld [vmem:[%s723] ss:$7 sm:$0xff]
        %s725 = scalar_lea.vmem [#allocation2], 454
        %v726 = vld [vmem:[%s725] ss:$7 sm:$0xff]
        %s727 = scalar_lea.vmem [#allocation2], 510
        %v728 = vld [vmem:[%s727] ss:$7 sm:$0xff]
        %s729 = scalar_lea.vmem [#allocation2], 566
        %v730 = vld [vmem:[%s729] ss:$7 sm:$0xff]
        %s731 = scalar_lea.vmem [#allocation2], 622
        %v732 = vld [vmem:[%s731] ss:$7 sm:$0xff]
        %s733 = scalar_lea.vmem [#allocation2], 678
        %v734 = vld [vmem:[%s733] ss:$7 sm:$0xff]
        %s735 = scalar_lea.vmem [#allocation2], 734
        %v736 = vld [vmem:[%s735] ss:$7 sm:$0xff]
        %s737 = scalar_lea.vmem [#allocation2], 790
        %v738 = vld [vmem:[%s737] ss:$7 sm:$0xff]
        %s739 = scalar_lea.vmem [#allocation2], 846
        %v740 = vld [vmem:[%s739] ss:$7 sm:$0xff]
        %741 = vxpose.xlu0.b32.start [1/16] %v710, 128
        %742 = vxpose.xlu0.b32.cont [2/16] %v712, 128
        %743 = vxpose.xlu0.b32.cont [3/16] %v714, 128
        %744 = vxpose.xlu0.b32.cont [4/16] %v716, 128
        %745 = vxpose.xlu0.b32.cont [5/16] %v718, 128
        %746 = vxpose.xlu0.b32.cont [6/16] %v720, 128
        %747 = vxpose.xlu0.b32.cont [7/16] %v722, 128
        %748 = vxpose.xlu0.b32.cont [8/16] %v724, 128
        %749 = vxpose.xlu0.b32.cont [9/16] %v726, 128
        %750 = vxpose.xlu0.b32.cont [10/16] %v728, 128
        %751 = vxpose.xlu0.b32.cont [11/16] %v730, 128
        %752 = vxpose.xlu0.b32.cont [12/16] %v732, 128
        %753 = vxpose.xlu0.b32.cont [13/16] %v734, 128
        %754 = vxpose.xlu0.b32.cont [14/16] %v736, 128
        %755 = vxpose.xlu0.b32.cont [15/16] %v738, 128
        %756 = vxpose.xlu0.b32.end [16/16] %v740, 128
        %v757 = vpop.trf.xlu0
        %v758 = vpop.trf.xlu0
        %v759 = vpop.trf.xlu0
        %v760 = vpop.trf.xlu0
        %v761 = vpop.trf.xlu0
        %v762 = vpop.trf.xlu0
        %v763 = vpop.trf.xlu0
        %v764 = vpop.trf.xlu0
        %v765 = vpop.trf.xlu0
        %v766 = vpop.trf.xlu0
        %v767 = vpop.trf.xlu0
        %v768 = vpop.trf.xlu0
        %v769 = vpop.trf.xlu0
        %v770 = vpop.trf.xlu0
        %v771 = vpop.trf.xlu0
        %v772 = vpop.trf.xlu0
        %s773 = scalar_lea.vmem %s155, 48 [#allocation6]
        %774 = vst [vmem:[%s773] sm:$0xff] %v757
        %775 = vst [vmem:[%s773 + $0x8] sm:$0xff] %v758
        %s776 = sand.u32 %s68, 1
        %s777 = scalar_lea.sflag [#allocation5], %s776
        %s778 = sand.u32 %s68, 1
        %s779 = smul.addr %s778, 64
        %s780 = scalar_lea.vmem [#allocation6], %s779
        // Predicated region
        $region29: #{tpu_custom_call.1} parent=23 // pred_check
          %p781 = pneg %p78
        $region30: #{tpu_custom_call.1} parent=23 // pred_check_branch
          %783 = sbr.rel (%p781) target = $region32
        $region31: #{tpu_custom_call.1} parent=23 // pred_region
          %s784 = smul.u32 2, %s23
          %786 = vsyncadd %s777, 0
          %s787 = smul.addr %s22, 8
          %s788 = sadd.s32 %s784, %s787
          %s789 = smul.addr %s788, 8
          %s790 = scalar_lea.hbm %s1, %s789
          %s791 = sshll.u32 %s780, 4
          %s792 = int_to_ptr.vmem [resolvable:$true] %s791
          %s793 = sshll.u32 %s790, 4
          %s794 = int_to_ptr.hbm [resolvable:$true] %s793
          %799 = dma.vmem_to_hbm [thread:$0]  %s792, 1024, %s794, %s777, 128, 128, 8
        $region32: #{tpu_custom_call.1} parent=23 // pred_fallthru
          _
      $region24: #{tpu_custom_call.1} parent=5 // pred_fallthru
        _
      %p800 = scmp.le.s32.totalorder 2, %s13
      // Predicated region
      $region33: #{tpu_custom_call.1} parent=5 // pred_check
        %p801 = pneg %p800
      $region34: #{tpu_custom_call.1} parent=5 // pred_check_branch
        %803 = sbr.rel (%p801) target = $region36
      $region35: #{tpu_custom_call.1} parent=5 // pred_region
        %s804 = ssub.s32 %s13, 2
        // Predicated region
        $region37: #{tpu_custom_call.1} parent=35 // pred_check
          %p805 = pneg %p84
        $region38: #{tpu_custom_call.1} parent=35 // pred_check_branch
          %807 = sbr.rel (%p805) target = $region40
        $region39: #{tpu_custom_call.1} parent=35 // pred_region
          %s808 = sand.u32 %s69, 1
          %s809 = scalar_lea.sflag [#allocation5], %s808
          %s810 = sand.u32 %s69, 1
          %s811 = smul.addr %s810, 64
          %s812 = scalar_lea.vmem [#allocation6], %s811
          %814 = dma.done %s809, 1024
        $region40: #{tpu_custom_call.1} parent=35 // pred_fallthru
          _
      $region36: #{tpu_custom_call.1} parent=5 // pred_fallthru
        _
    $region6: #{tpu_custom_call.1} parent=1 // loop_footer
      %s17 = sadd.s32 1, %s13
    $region7: #{tpu_custom_call.1} parent=1 // loop_footer_branch
      %12 = sbr.rel target = $region3
    $region8: #{tpu_custom_call.1} parent=1 // loop_exit
      _
    %815 = vsyncpa [#allocation4], 1
    %s816 = scalar_lea.sflag [#allocation4], 1
    %817 = vsyncpa %s816, 1
    %818 = vsyncpa [#allocation5], 1
    %s819 = scalar_lea.sflag [#allocation5], 1
    %820 = vsyncpa %s819, 1

</llo_original>
